<compile_context>
chip_gen: v5e
topology: v5e:2x2
jax: 0.10.0
libtpu: 0.0.40
codegen_flags: <defaults>
</compile_context>

<pallas_src>
import functools

import jax
import jax.numpy as jnp
from jax.experimental import pallas as pl
from jax.experimental.pallas import tpu as pltpu


def _round_up(v, m):
    return (v + m - 1) // m * m


def fnn_kernel(x_ref,
               w1_ref, b1_ref,
               w2_ref, b2_ref,
               w3_ref, b3_ref,
               w4_ref, b4_ref,
               w5_ref, b5_ref,
               o_ref):
    """Fused forward pass for one (TM, n_inputs) batch tile; weights resident in VMEM."""
    dot = functools.partial(jnp.dot, preferred_element_type=jnp.float32)

    h = dot(x_ref[...], w1_ref[...]) + b1_ref[...]                 # (TM, 128) f32
    h = jnp.maximum(h, 0.0)
    h = dot(h.astype(jnp.bfloat16), w2_ref[...]) + b2_ref[...]     # (TM, 256) f32
    h = jnp.maximum(h, 0.0)
    h = dot(h.astype(jnp.bfloat16), w3_ref[...]) + b3_ref[...]     # (TM, 256) f32
    h = jnp.maximum(h, 0.0)
    # Dropout(p=0.2): identity at inference (PyTorch .eval() semantics).
    # TODO(synk): training-mode stochastic dropout (pltpu.prng_seed/prng_random_bits) not emitted.
    h = dot(h.astype(jnp.bfloat16), w4_ref[...]) + b4_ref[...]     # (TM, 128) f32
    h = jnp.maximum(h, 0.0)
    h = dot(h.astype(jnp.bfloat16), w5_ref[...]) + b5_ref[...]     # (TM, 1) f32
    o_ref[...] = jax.nn.sigmoid(h).astype(o_ref.dtype)


def fnn_forward(x, params, *, block_batch=256):
    """x: (B, n_inputs). params: lane-padded bf16 weights (in,out) + f32 biases (1,out)."""
    B, n_in = x.shape

    # Batch tile: multiple of 8 sublanes; default 256 rows (multiple of 256 for the
    # v6e/v7x MXU and of 128 for v5e).  Small batches shrink the tile instead of
    # padding all the way up.
    tm = min(block_batch, _round_up(max(B, 1), 8))
    b_pad = _round_up(B, tm)

    x_bf16 = x.astype(jnp.bfloat16)
    if b_pad != B:
        x_bf16 = jnp.pad(x_bf16, ((0, b_pad - B), (0, 0)))

    weight_args = (params["w1"], params["b1"],
                   params["w2"], params["b2"],
                   params["w3"], params["b3"],
                   params["w4"], params["b4"],
                   params["w5"], params["b5"])

    # Full-shape blocks + constant index_map -> DMA'd once, resident across grid steps.
    weight_specs = [pl.BlockSpec(a.shape, lambda i: (0, 0)) for a in weight_args]

    ws = [params[f"w{i}"] for i in range(1, 6)]
    flops = 2 * b_pad * sum(int(w.shape[0]) * int(w.shape[1]) for w in ws)
    bytes_accessed = (x_bf16.size * x_bf16.dtype.itemsize
                      + b_pad * 4                                   # (B,1) f32 output
                      + sum(a.size * a.dtype.itemsize for a in weight_args))

    out = pl.pallas_call(
        fnn_kernel,
        out_shape=jax.ShapeDtypeStruct((b_pad, 1), jnp.float32),
        grid=(b_pad // tm,),
        in_specs=[pl.BlockSpec((tm, n_in), lambda i: (i, 0))] + weight_specs,
        out_specs=pl.BlockSpec((tm, 1), lambda i: (i, 0)),
        compiler_params=pltpu.CompilerParams(
            dimension_semantics=("parallel",)),
        cost_estimate=pl.CostEstimate(
            flops=flops, transcendentals=b_pad, bytes_accessed=bytes_accessed),
    )(x_bf16, *weight_args)
    return out[:B]


def _layer_dims(n_inputs):
    logical = [(n_inputs, 100), (100, 200), (200, 200), (200, 50), (50, 1)]
    # Lane-pad hidden widths to multiples of 128; the scalar output stays width 1
    # (tiny masked store, accepted as a minor item per the perf review).
    pad_out = [_round_up(o, 128) if o > 1 else 1 for _, o in logical]
    pad_in = [n_inputs] + pad_out[:-1]
    return logical, list(zip(pad_in, pad_out))


def init_params(key, n_inputs):
    """nn.Linear-style uniform init; weights stored as (in, out) = weight.T, zero-padded
    to MXU/lane-friendly shapes.  Weights bf16, biases f32 of shape (1, out)."""
    logical, padded = _layer_dims(n_inputs)
    params = {}
    for i, ((fi, fo), (pi, po)) in enumerate(zip(logical, padded), start=1):
        key, kw, kb = jax.random.split(key, 3)
        bound = 1.0 / float(fi) ** 0.5
        w = jax.random.uniform(kw, (fi, fo), jnp.float32, minval=-bound, maxval=bound)
        b = jax.random.uniform(kb, (fo,), jnp.float32, minval=-bound, maxval=bound)
        params[f"w{i}"] = (jnp.zeros((pi, po), jnp.float32)
                           .at[:fi, :fo].set(w).astype(jnp.bfloat16))
        params[f"b{i}"] = jnp.zeros((1, po), jnp.float32).at[0, :fo].set(b)
    return params


def fnn_reference(x, params):
    """Plain-JAX reference using the same bf16-operand / f32-accumulate recipe."""
    dot = functools.partial(jnp.dot, preferred_element_type=jnp.float32)
    h = x.astype(jnp.bfloat16)
    h = jnp.maximum(dot(h, params["w1"]) + params["b1"], 0.0)
    h = jnp.maximum(dot(h.astype(jnp.bfloat16), params["w2"]) + params["b2"], 0.0)
    h = jnp.maximum(dot(h.astype(jnp.bfloat16), params["w3"]) + params["b3"], 0.0)
    h = jnp.maximum(dot(h.astype(jnp.bfloat16), params["w4"]) + params["b4"], 0.0)
    return jax.nn.sigmoid(dot(h.astype(jnp.bfloat16), params["w5"]) + params["b5"])


if __name__ == "__main__":
    key = jax.random.PRNGKey(0)
    n_inputs = 32
    batch = 8

    kx, kp = jax.random.split(key)
    x = jax.random.normal(kx, (batch, n_inputs), jnp.float32)
    params = init_params(kp, n_inputs)

    out = fnn_forward(x, params)
    jax.block_until_ready(out)

    # sanity: shape (B, 1), finite, sigmoid range (allow f32 saturation to 0/1)
    assert out.shape == (batch, 1)
    assert bool(jnp.all(jnp.isfinite(out)))
    assert bool(jnp.all((out >= 0.0) & (out <= 1.0)))

    ref_out = fnn_reference(x, params)
    assert jnp.allclose(out, ref_out, atol=1e-3, rtol=1e-3), (out, ref_out)
    print("KERNEL_OK")
</pallas_src>

<mosaic_0001>
module attributes {stable_mosaic.version = 11 : i64} {
  func.func @fnn_kernel(%arg0: i32, %arg1: memref<8x32xbf16, #tpu.memory_space<vmem>>, %arg2: memref<32x128xbf16, #tpu.memory_space<vmem>>, %arg3: memref<1x128xf32, #tpu.memory_space<vmem>>, %arg4: memref<128x256xbf16, #tpu.memory_space<vmem>>, %arg5: memref<1x256xf32, #tpu.memory_space<vmem>>, %arg6: memref<256x256xbf16, #tpu.memory_space<vmem>>, %arg7: memref<1x256xf32, #tpu.memory_space<vmem>>, %arg8: memref<256x128xbf16, #tpu.memory_space<vmem>>, %arg9: memref<1x128xf32, #tpu.memory_space<vmem>>, %arg10: memref<128x1xbf16, #tpu.memory_space<vmem>>, %arg11: memref<1x1xf32, #tpu.memory_space<vmem>>, %arg12: memref<8x1xf32, #tpu.memory_space<vmem>>) attributes {dimension_semantics = [#tpu.dimension_semantics<parallel>], iteration_bounds = array<i64: 1>, scalar_prefetch = 0 : i64, scratch_operands = 0 : i64, tpu.core_type = #tpu.core_type<tc>, window_params = [{transform_indices = @transform_0, window_bounds = array<i64: 8, 32>}, {pipeline_mode = #tpu.pipeline_mode<synchronous>, transform_indices = @transform_1, window_bounds = array<i64: 32, 128>}, {pipeline_mode = #tpu.pipeline_mode<synchronous>, transform_indices = @transform_2, window_bounds = array<i64: 1, 128>}, {pipeline_mode = #tpu.pipeline_mode<synchronous>, transform_indices = @transform_3, window_bounds = array<i64: 128, 256>}, {pipeline_mode = #tpu.pipeline_mode<synchronous>, transform_indices = @transform_4, window_bounds = array<i64: 1, 256>}, {pipeline_mode = #tpu.pipeline_mode<synchronous>, transform_indices = @transform_5, window_bounds = array<i64: 256, 256>}, {pipeline_mode = #tpu.pipeline_mode<synchronous>, transform_indices = @transform_6, window_bounds = array<i64: 1, 256>}, {pipeline_mode = #tpu.pipeline_mode<synchronous>, transform_indices = @transform_7, window_bounds = array<i64: 256, 128>}, {pipeline_mode = #tpu.pipeline_mode<synchronous>, transform_indices = @transform_8, window_bounds = array<i64: 1, 128>}, {pipeline_mode = #tpu.pipeline_mode<synchronous>, transform_indices = @transform_9, window_bounds = array<i64: 128, 1>}, {pipeline_mode = #tpu.pipeline_mode<synchronous>, transform_indices = @transform_10, window_bounds = array<i64: 1, 1>}, {transform_indices = @transform_11, window_bounds = array<i64: 8, 1>}]} {
    %c0 = arith.constant 0 : index
    %c0_0 = arith.constant 0 : index
    %0 = vector.load %arg1[%c0, %c0_0] : memref<8x32xbf16, #tpu.memory_space<vmem>>, vector<8x32xbf16>
    %c0_1 = arith.constant 0 : index
    %c0_2 = arith.constant 0 : index
    %1 = vector.load %arg2[%c0_1, %c0_2] : memref<32x128xbf16, #tpu.memory_space<vmem>>, vector<32x128xbf16>
    %cst = arith.constant dense<0.000000e+00> : vector<8x128xf32>
    %2 = tpu.matmul %0, %1, %cst {dimension_numbers = #tpu.dot_dimension_numbers<[1], [0], [0], [1], [0, 0, 1, 1], [], []>} : vector<8x32xbf16>, vector<32x128xbf16>, vector<8x128xf32> -> vector<8x128xf32>
    %c0_3 = arith.constant 0 : index
    %c0_4 = arith.constant 0 : index
    %3 = vector.load %arg3[%c0_3, %c0_4] : memref<1x128xf32, #tpu.memory_space<vmem>>, vector<1x128xf32>
    %4 = vector.broadcast %3 : vector<1x128xf32> to vector<8x128xf32>
    %5 = arith.addf %2, %4 : vector<8x128xf32>
    %cst_5 = arith.constant 0.000000e+00 : f32
    %6 = vector.broadcast %cst_5 : f32 to vector<8x128xf32>
    %7 = arith.maximumf %5, %6 : vector<8x128xf32>
    %8 = arith.truncf %7 : vector<8x128xf32> to vector<8x128xbf16>
    %c0_6 = arith.constant 0 : index
    %c0_7 = arith.constant 0 : index
    %9 = vector.load %arg4[%c0_6, %c0_7] : memref<128x256xbf16, #tpu.memory_space<vmem>>, vector<128x256xbf16>
    %cst_8 = arith.constant dense<0.000000e+00> : vector<8x256xf32>
    %10 = tpu.matmul %8, %9, %cst_8 {dimension_numbers = #tpu.dot_dimension_numbers<[1], [0], [0], [1], [0, 0, 1, 1], [], []>} : vector<8x128xbf16>, vector<128x256xbf16>, vector<8x256xf32> -> vector<8x256xf32>
    %c0_9 = arith.constant 0 : index
    %c0_10 = arith.constant 0 : index
    %11 = vector.load %arg5[%c0_9, %c0_10] : memref<1x256xf32, #tpu.memory_space<vmem>>, vector<1x256xf32>
    %12 = vector.broadcast %11 : vector<1x256xf32> to vector<8x256xf32>
    %13 = arith.addf %10, %12 : vector<8x256xf32>
    %cst_11 = arith.constant 0.000000e+00 : f32
    %14 = vector.broadcast %cst_11 : f32 to vector<8x256xf32>
    %15 = arith.maximumf %13, %14 : vector<8x256xf32>
    %16 = arith.truncf %15 : vector<8x256xf32> to vector<8x256xbf16>
    %c0_12 = arith.constant 0 : index
    %c0_13 = arith.constant 0 : index
    %17 = vector.load %arg6[%c0_12, %c0_13] : memref<256x256xbf16, #tpu.memory_space<vmem>>, vector<256x256xbf16>
    %cst_14 = arith.constant dense<0.000000e+00> : vector<8x256xf32>
    %18 = tpu.matmul %16, %17, %cst_14 {dimension_numbers = #tpu.dot_dimension_numbers<[1], [0], [0], [1], [0, 0, 1, 1], [], []>} : vector<8x256xbf16>, vector<256x256xbf16>, vector<8x256xf32> -> vector<8x256xf32>
    %c0_15 = arith.constant 0 : index
    %c0_16 = arith.constant 0 : index
    %19 = vector.load %arg7[%c0_15, %c0_16] : memref<1x256xf32, #tpu.memory_space<vmem>>, vector<1x256xf32>
    %20 = vector.broadcast %19 : vector<1x256xf32> to vector<8x256xf32>
    %21 = arith.addf %18, %20 : vector<8x256xf32>
    %cst_17 = arith.constant 0.000000e+00 : f32
    %22 = vector.broadcast %cst_17 : f32 to vector<8x256xf32>
    %23 = arith.maximumf %21, %22 : vector<8x256xf32>
    %24 = arith.truncf %23 : vector<8x256xf32> to vector<8x256xbf16>
    %c0_18 = arith.constant 0 : index
    %c0_19 = arith.constant 0 : index
    %25 = vector.load %arg8[%c0_18, %c0_19] : memref<256x128xbf16, #tpu.memory_space<vmem>>, vector<256x128xbf16>
    %cst_20 = arith.constant dense<0.000000e+00> : vector<8x128xf32>
    %26 = tpu.matmul %24, %25, %cst_20 {dimension_numbers = #tpu.dot_dimension_numbers<[1], [0], [0], [1], [0, 0, 1, 1], [], []>} : vector<8x256xbf16>, vector<256x128xbf16>, vector<8x128xf32> -> vector<8x128xf32>
    %c0_21 = arith.constant 0 : index
    %c0_22 = arith.constant 0 : index
    %27 = vector.load %arg9[%c0_21, %c0_22] : memref<1x128xf32, #tpu.memory_space<vmem>>, vector<1x128xf32>
    %28 = vector.broadcast %27 : vector<1x128xf32> to vector<8x128xf32>
    %29 = arith.addf %26, %28 : vector<8x128xf32>
    %cst_23 = arith.constant 0.000000e+00 : f32
    %30 = vector.broadcast %cst_23 : f32 to vector<8x128xf32>
    %31 = arith.maximumf %29, %30 : vector<8x128xf32>
    %32 = arith.truncf %31 : vector<8x128xf32> to vector<8x128xbf16>
    %c0_24 = arith.constant 0 : index
    %c0_25 = arith.constant 0 : index
    %33 = vector.load %arg10[%c0_24, %c0_25] : memref<128x1xbf16, #tpu.memory_space<vmem>>, vector<128x1xbf16>
    %cst_26 = arith.constant dense<0.000000e+00> : vector<8x1xf32>
    %34 = tpu.matmul %32, %33, %cst_26 {dimension_numbers = #tpu.dot_dimension_numbers<[1], [0], [0], [1], [0, 0, 1, 1], [], []>} : vector<8x128xbf16>, vector<128x1xbf16>, vector<8x1xf32> -> vector<8x1xf32>
    %c0_27 = arith.constant 0 : index
    %c0_28 = arith.constant 0 : index
    %35 = vector.load %arg11[%c0_27, %c0_28] : memref<1x1xf32, #tpu.memory_space<vmem>>, vector<1x1xf32>
    %36 = vector.broadcast %35 : vector<1x1xf32> to vector<8x1xf32>
    %37 = arith.addf %34, %36 : vector<8x1xf32>
    %38 = arith.negf %37 : vector<8x1xf32>
    %39 = math.exp %38 : vector<8x1xf32>
    %cst_29 = arith.constant 1.000000e+00 : f32
    %40 = vector.broadcast %cst_29 : f32 to vector<8x1xf32>
    %41 = arith.addf %40, %39 : vector<8x1xf32>
    %42 = arith.divf %40, %41 : vector<8x1xf32>
    %c0_30 = arith.constant 0 : index
    %c0_31 = arith.constant 0 : index
    %43 = vector.load %arg12[%c0_30, %c0_31] : memref<8x1xf32, #tpu.memory_space<vmem>>, vector<8x1xf32>
    tpu.vector_store %arg12[%c0_30, %c0_31], %42 {strides = array<i32>} : memref<8x1xf32, #tpu.memory_space<vmem>>, vector<8x1xf32>,
    return
  }
  func.func @transform_0(%arg0: i32) -> (i32, i32) {
    %c0_i32 = arith.constant 0 : i32
    %c0_i32_0 = arith.constant 0 : i32
    return %arg0, %c0_i32 : i32, i32
  }
  func.func @transform_1(%arg0: i32) -> (i32, i32) {
    %c0_i32 = arith.constant 0 : i32
    %c0_i32_0 = arith.constant 0 : i32
    %c0_i32_1 = arith.constant 0 : i32
    return %c0_i32, %c0_i32_0 : i32, i32
  }
  func.func @transform_2(%arg0: i32) -> (i32, i32) {
    %c0_i32 = arith.constant 0 : i32
    %c0_i32_0 = arith.constant 0 : i32
    %c0_i32_1 = arith.constant 0 : i32
    return %c0_i32, %c0_i32_0 : i32, i32
  }
  func.func @transform_3(%arg0: i32) -> (i32, i32) {
    %c0_i32 = arith.constant 0 : i32
    %c0_i32_0 = arith.constant 0 : i32
    %c0_i32_1 = arith.constant 0 : i32
    return %c0_i32, %c0_i32_0 : i32, i32
  }
  func.func @transform_4(%arg0: i32) -> (i32, i32) {
    %c0_i32 = arith.constant 0 : i32
    %c0_i32_0 = arith.constant 0 : i32
    %c0_i32_1 = arith.constant 0 : i32
    return %c0_i32, %c0_i32_0 : i32, i32
  }
  func.func @transform_5(%arg0: i32) -> (i32, i32) {
    %c0_i32 = arith.constant 0 : i32
    %c0_i32_0 = arith.constant 0 : i32
    %c0_i32_1 = arith.constant 0 : i32
    return %c0_i32, %c0_i32_0 : i32, i32
  }
  func.func @transform_6(%arg0: i32) -> (i32, i32) {
    %c0_i32 = arith.constant 0 : i32
    %c0_i32_0 = arith.constant 0 : i32
    %c0_i32_1 = arith.constant 0 : i32
    return %c0_i32, %c0_i32_0 : i32, i32
  }
  func.func @transform_7(%arg0: i32) -> (i32, i32) {
    %c0_i32 = arith.constant 0 : i32
    %c0_i32_0 = arith.constant 0 : i32
    %c0_i32_1 = arith.constant 0 : i32
    return %c0_i32, %c0_i32_0 : i32, i32
  }
  func.func @transform_8(%arg0: i32) -> (i32, i32) {
    %c0_i32 = arith.constant 0 : i32
    %c0_i32_0 = arith.constant 0 : i32
    %c0_i32_1 = arith.constant 0 : i32
    return %c0_i32, %c0_i32_0 : i32, i32
  }
  func.func @transform_9(%arg0: i32) -> (i32, i32) {
    %c0_i32 = arith.constant 0 : i32
    %c0_i32_0 = arith.constant 0 : i32
    %c0_i32_1 = arith.constant 0 : i32
    return %c0_i32, %c0_i32_0 : i32, i32
  }
  func.func @transform_10(%arg0: i32) -> (i32, i32) {
    %c0_i32 = arith.constant 0 : i32
    %c0_i32_0 = arith.constant 0 : i32
    %c0_i32_1 = arith.constant 0 : i32
    return %c0_i32, %c0_i32_0 : i32, i32
  }
  func.func @transform_11(%arg0: i32) -> (i32, i32) {
    %c0_i32 = arith.constant 0 : i32
    %c0_i32_0 = arith.constant 0 : i32
    return %arg0, %c0_i32 : i32, i32
  }
}

</mosaic_0001>

<llo_original>
// kernel: tpu_custom_call.1
$region0: #{tpu_custom_call.1}
  #allocation0 [shape = 'u32[]', space=smem, size = 0x4, offset = 0x4, fixed_abs, tag = 'smem constant byte address 0x4 - core index']
  #allocation1 [shape = 'u32[72,128]{1,0:T(1,128)}', space=vmem, size = 0x9000, scoped, tag = 'internal scratch']
  #allocation2 [shape = 'f32[1,1]{1,0:T(1,128)S(1)}', space=vmem, size = 0x200, scoped, tag = 'scoped memory for tpu_custom_call.1']
  %s0 = inlined_call_operand.vmem [shape: bf16[8,32], index: 0, kind: input, shape index: {}]
  %s1 = inlined_call_operand.vmem [shape: bf16[32,128], index: 1, kind: input, shape index: {}]
  %s2 = inlined_call_operand.vmem [shape: f32[1,128], index: 2, kind: input, shape index: {}]
  %s3 = inlined_call_operand.hbm [shape: bf16[128,256], index: 3, kind: input, shape index: {}]
  %s4 = inlined_call_operand.vmem [shape: f32[1,256], index: 4, kind: input, shape index: {}]
  %s5 = inlined_call_operand.hbm [shape: bf16[256,256], index: 5, kind: input, shape index: {}]
  %s6 = inlined_call_operand.vmem [shape: f32[1,256], index: 6, kind: input, shape index: {}]
  %s7 = inlined_call_operand.hbm [shape: bf16[256,128], index: 7, kind: input, shape index: {}]
  %s8 = inlined_call_operand.vmem [shape: f32[1,128], index: 8, kind: input, shape index: {}]
  %s9 = inlined_call_operand.vmem [shape: bf16[128,1], index: 9, kind: input, shape index: {}]
  %s10 = inlined_call_operand.<no memory space> [shape: f32[1,1], index: 10, kind: input, shape index: {}]
  %s11 = inlined_call_operand.vmem [shape: f32[8,1], index: 11, kind: output, shape index: {}]
  %s12 = sld [smem:[#allocation0]]
  $region66: #{tpu_custom_call.1} parent=0
    _
  %s14 = ssub.s32 1, %s12
  %s15 = scalar_select 0, %s14, %s12
  %v16 = vstv %s10
  %17 = vst [vmem:[#allocation2] sm:$0x1] %v16
  $region1: #{tpu_custom_call.1} parent=0
    #allocation3 [shape = 'u8[65536]{0}', space=vmem, size = 0x10000, scoped, tag = 'input window, operand 3, single buffered']
    #allocation4 [shape = 's32[1]{0}', space=sflag, size = 0x4, scoped, tag = 'scoped memory for tpu_custom_call.1']
    #allocation5 [shape = 'u8[131072]{0}', space=vmem, size = 0x20000, scoped, tag = 'input window, operand 5, single buffered']
    #allocation6 [shape = 's32[1]{0}', space=sflag, size = 0x4, scoped, tag = 'scoped memory for tpu_custom_call.1']
    #allocation7 [shape = 'u8[65536]{0}', space=vmem, size = 0x10000, scoped, tag = 'input window, operand 7, single buffered']
    %18 = vsyncpa [#allocation4], 0
    %19 = vsyncpa [#allocation6], 0
    // Predicated region
    $region2: #{tpu_custom_call.1} parent=1 // pred_check
      _
    $region3: #{tpu_custom_call.1} parent=1 // pred_check_branch
      %21 = sbr.rel (0) target = $region5
    $region4: #{tpu_custom_call.1} parent=1 // pred_region
      _
    $region5: #{tpu_custom_call.1} parent=1 // pred_fallthru
      _
    // Predicated region
    $region6: #{tpu_custom_call.1} parent=1 // pred_check
      _
    $region7: #{tpu_custom_call.1} parent=1 // pred_check_branch
      %23 = sbr.rel (0) target = $region9
    $region8: #{tpu_custom_call.1} parent=1 // pred_region
      _
    $region9: #{tpu_custom_call.1} parent=1 // pred_fallthru
      _
    // Predicated region
    $region10: #{tpu_custom_call.1} parent=1 // pred_check
      _
    $region11: #{tpu_custom_call.1} parent=1 // pred_check_branch
      %25 = sbr.rel (0) target = $region13
    $region12: #{tpu_custom_call.1} parent=1 // pred_region
      _
    $region13: #{tpu_custom_call.1} parent=1 // pred_fallthru
      _
    // Predicated region
    $region14: #{tpu_custom_call.1} parent=1 // pred_check
      _
    $region15: #{tpu_custom_call.1} parent=1 // pred_check_branch
      %27 = sbr.rel (0) target = $region17
    $region16: #{tpu_custom_call.1} parent=1 // pred_region
      %29 = vsyncadd [#allocation4], 0
      %s30 = sshll.u32 %s3, 4
      %s31 = int_to_ptr.hbm [resolvable:$true] %s30
      %s32 = sshll.u32 [#allocation3], 4
      %s33 = int_to_ptr.vmem [resolvable:$true] %s32
      %38 = dma.hbm_to_vmem [thread:$0]  %s31, 2048, %s33, [#allocation4], 128, 128, 8
    $region17: #{tpu_custom_call.1} parent=1 // pred_fallthru
      _
    // Predicated region
    $region18: #{tpu_custom_call.1} parent=1 // pred_check
      _
    $region19: #{tpu_custom_call.1} parent=1 // pred_check_branch
      %40 = sbr.rel (0) target = $region21
    $region20: #{tpu_custom_call.1} parent=1 // pred_region
      _
    $region21: #{tpu_custom_call.1} parent=1 // pred_fallthru
      _
    // Predicated region
    $region22: #{tpu_custom_call.1} parent=1 // pred_check
      _
    $region23: #{tpu_custom_call.1} parent=1 // pred_check_branch
      %42 = sbr.rel (0) target = $region25
    $region24: #{tpu_custom_call.1} parent=1 // pred_region
      %44 = vsyncadd [#allocation6], 0
      %s45 = sshll.u32 %s5, 4
      %s46 = int_to_ptr.hbm [resolvable:$true] %s45
      %s47 = sshll.u32 [#allocation5], 4
      %s48 = int_to_ptr.vmem [resolvable:$true] %s47
      %53 = dma.hbm_to_vmem [thread:$0]  %s46, 4096, %s48, [#allocation6], 128, 128, 8
    $region25: #{tpu_custom_call.1} parent=1 // pred_fallthru
      _
    // Predicated region
    $region26: #{tpu_custom_call.1} parent=1 // pred_check
      _
    $region27: #{tpu_custom_call.1} parent=1 // pred_check_branch
      %55 = sbr.rel (0) target = $region29
    $region28: #{tpu_custom_call.1} parent=1 // pred_region
      _
    $region29: #{tpu_custom_call.1} parent=1 // pred_fallthru
      _
    // Predicated region
    $region30: #{tpu_custom_call.1} parent=1 // pred_check
      _
    $region31: #{tpu_custom_call.1} parent=1 // pred_check_branch
      %57 = sbr.rel (0) target = $region33
    $region32: #{tpu_custom_call.1} parent=1 // pred_region
      %59 = vsyncadd [#allocation6], 0
      %s60 = sshll.u32 %s7, 4
      %s61 = int_to_ptr.hbm [resolvable:$true] %s60
      %s62 = sshll.u32 [#allocation7], 4
      %s63 = int_to_ptr.vmem [resolvable:$true] %s62
      %68 = dma.hbm_to_vmem [thread:$0]  %s61, 2048, %s63, [#allocation6], 64, 64, 4
    $region33: #{tpu_custom_call.1} parent=1 // pred_fallthru
      _
    // Predicated region
    $region34: #{tpu_custom_call.1} parent=1 // pred_check
      _
    $region35: #{tpu_custom_call.1} parent=1 // pred_check_branch
      %70 = sbr.rel (0) target = $region37
    $region36: #{tpu_custom_call.1} parent=1 // pred_region
      _
    $region37: #{tpu_custom_call.1} parent=1 // pred_fallthru
      _
    // Predicated region
    $region38: #{tpu_custom_call.1} parent=1 // pred_check
      _
    $region39: #{tpu_custom_call.1} parent=1 // pred_check_branch
      %72 = sbr.rel (0) target = $region41
    $region40: #{tpu_custom_call.1} parent=1 // pred_region
      _
    $region41: #{tpu_custom_call.1} parent=1 // pred_fallthru
      _
    // Predicated region
    $region42: #{tpu_custom_call.1} parent=1 // pred_check
      _
    $region43: #{tpu_custom_call.1} parent=1 // pred_check_branch
      %74 = sbr.rel (0) target = $region45
    $region44: #{tpu_custom_call.1} parent=1 // pred_region
      _
    $region45: #{tpu_custom_call.1} parent=1 // pred_fallthru
      _
    // Predicated region
    $region46: #{tpu_custom_call.1} parent=1 // pred_check
      _
    $region47: #{tpu_custom_call.1} parent=1 // pred_check_branch
      %76 = sbr.rel (0) target = $region49
    $region48: #{tpu_custom_call.1} parent=1 // pred_region
      %78 = dma.done [#allocation4], 2048
    $region49: #{tpu_custom_call.1} parent=1 // pred_fallthru
      _
    // Predicated region
    $region50: #{tpu_custom_call.1} parent=1 // pred_check
      _
    $region51: #{tpu_custom_call.1} parent=1 // pred_check_branch
      %80 = sbr.rel (0) target = $region53
    $region52: #{tpu_custom_call.1} parent=1 // pred_region
      %82 = dma.done [#allocation6], 4096
    $region53: #{tpu_custom_call.1} parent=1 // pred_fallthru
      _
    // Predicated region
    $region54: #{tpu_custom_call.1} parent=1 // pred_check
      _
    $region55: #{tpu_custom_call.1} parent=1 // pred_check_branch
      %84 = sbr.rel (0) target = $region57
    $region56: #{tpu_custom_call.1} parent=1 // pred_region
      %86 = dma.done [#allocation6], 2048
    $region57: #{tpu_custom_call.1} parent=1 // pred_fallthru
      _
    %v88 = vld [vmem:[%s0] sm:$0xf]
    %v89 = vld [vmem:[%s1] sm:$0xf]
    %v90 = vld [vmem:[%s1 + $0x4] sm:$0xf]
    %v91 = vld [vmem:[%s1 + $0x8] sm:$0xf]
    %v92 = vld [vmem:[%s1 + $0xc] sm:$0xf]
    %v93 = vld [vmem:[%s2] sm:$0x1]
    %v95 = vperm.slane %v93, 0
    %v101 = vunpack.c.l.b16 %v89
    %v102 = vunpack.c.l.b16 %v90
    %v103 = vunpack.c.l.b16 %v91
    %v104 = vunpack.c.l.b16 %v92
    %v105 = vpack.c.b16 %v102, %v101
    %v106 = vpack.c.b16 %v104, %v103
    %vm109 = vcmask 261120
    %v111 = vsel %vm109, %v88, 0
    %113 = vmatpush.bf16.msra.mxu0 0
    %114 = vmatpush.bf16.msra.mxu0 0
    %115 = vmatpush.bf16.msra.mxu0 0
    %116 = vmatpush.bf16.msra.mxu0 0
    %117 = vmatpush.bf16.msra.mxu0 0
    %118 = vmatpush.bf16.msra.mxu0 0
    %119 = vmatpush.bf16.msra.mxu0 %v106
    %120 = vmatpush.bf16.msra.mxu0 %v105
    %121 = vmatmul.bf16.gmra.mxu0 %v111
    %v122 = vpop.f32.mrf.mxu0
    %v123 = vadd.f32 %v95, %v122
    %v124 = vpop.f32.mrf.mxu0
    %125 = vdwg.mxu0
    %v126 = vmax.f32 %v123, 0.0
    %v127 = vpack.c.bf16 %v126, %v126
    %v128 = vld [vmem:[#allocation3] sm:$0xff]
    %v129 = vld [vmem:[#allocation3 + $0x8] sm:$0xff]
    %v130 = vld [vmem:[#allocation3 + $0x10] sm:$0xff]
    %v131 = vld [vmem:[#allocation3 + $0x18] sm:$0xff]
    %v132 = vld [vmem:[#allocation3 + $0x20] sm:$0xff]
    %v133 = vld [vmem:[#allocation3 + $0x28] sm:$0xff]
    %v134 = vld [vmem:[#allocation3 + $0x30] sm:$0xff]
    %v135 = vld [vmem:[#allocation3 + $0x38] sm:$0xff]
    %v136 = vld [vmem:[#allocation3 + $0x40] sm:$0xff]
    %v137 = vld [vmem:[#allocation3 + $0x48] sm:$0xff]
    %v138 = vld [vmem:[#allocation3 + $0x50] sm:$0xff]
    %v139 = vld [vmem:[#allocation3 + $0x58] sm:$0xff]
    %v140 = vld [vmem:[#allocation3 + $0x60] sm:$0xff]
    %v141 = vld [vmem:[#allocation3 + $0x68] sm:$0xff]
    %v142 = vld [vmem:[#allocation3 + $0x70] sm:$0xff]
    %v143 = vld [vmem:[#allocation3 + $0x78] sm:$0xff]
    %v144 = vld [vmem:[%s4] sm:$0x3]
    %v146 = vperm.slane %v144, 0
    %v147 = vperm.slane %v144, 1
    %v166 = vunpack.c.l.b16 %v128
    %v167 = vunpack.c.h.b16 %v128
    %v168 = vunpack.c.l.b16 %v129
    %v169 = vunpack.c.h.b16 %v129
    %v170 = vunpack.c.l.b16 %v130
    %v171 = vunpack.c.h.b16 %v130
    %v172 = vunpack.c.l.b16 %v131
    %v173 = vunpack.c.h.b16 %v131
    %v174 = vunpack.c.l.b16 %v132
    %v175 = vunpack.c.h.b16 %v132
    %v176 = vunpack.c.l.b16 %v133
    %v177 = vunpack.c.h.b16 %v133
    %v178 = vunpack.c.l.b16 %v134
    %v179 = vunpack.c.h.b16 %v134
    %v180 = vunpack.c.l.b16 %v135
    %v181 = vunpack.c.h.b16 %v135
    %v182 = vunpack.c.l.b16 %v136
    %v183 = vunpack.c.h.b16 %v136
    %v184 = vunpack.c.l.b16 %v137
    %v185 = vunpack.c.h.b16 %v137
    %v186 = vunpack.c.l.b16 %v138
    %v187 = vunpack.c.h.b16 %v138
    %v188 = vunpack.c.l.b16 %v139
    %v189 = vunpack.c.h.b16 %v139
    %v190 = vunpack.c.l.b16 %v140
    %v191 = vunpack.c.h.b16 %v140
    %v192 = vunpack.c.l.b16 %v141
    %v193 = vunpack.c.h.b16 %v141
    %v194 = vunpack.c.l.b16 %v142
    %v195 = vunpack.c.h.b16 %v142
    %v196 = vunpack.c.l.b16 %v143
    %v197 = vunpack.c.h.b16 %v143
    %v198 = vpack.c.b16 %v168, %v166
    %v199 = vpack.c.b16 %v169, %v167
    %v200 = vpack.c.b16 %v172, %v170
    %v201 = vpack.c.b16 %v173, %v171
    %v202 = vpack.c.b16 %v176, %v174
    %v203 = vpack.c.b16 %v177, %v175
    %v204 = vpack.c.b16 %v180, %v178
    %v205 = vpack.c.b16 %v181, %v179
    %v206 = vpack.c.b16 %v184, %v182
    %v207 = vpack.c.b16 %v185, %v183
    %v208 = vpack.c.b16 %v188, %v186
    %v209 = vpack.c.b16 %v189, %v187
    %v210 = vpack.c.b16 %v192, %v190
    %v211 = vpack.c.b16 %v193, %v191
    %v212 = vpack.c.b16 %v196, %v194
    %v213 = vpack.c.b16 %v197, %v195
    %230 = vmatpush.bf16.msra.mxu0 %v212
    %231 = vmatpush.bf16.msra.mxu0 %v210
    %232 = vmatpush.bf16.msra.mxu0 %v208
    %233 = vmatpush.bf16.msra.mxu0 %v206
    %234 = vmatpush.bf16.msra.mxu0 %v204
    %235 = vmatpush.bf16.msra.mxu0 %v202
    %236 = vmatpush.bf16.msra.mxu0 %v200
    %237 = vmatpush.bf16.msra.mxu0 %v198
    %238 = vmatmul.bf16.gmra.mxu0 %v127
    %v239 = vpop.f32.mrf.mxu0
    %v240 = vadd.f32 %v146, %v239
    %v241 = vpop.f32.mrf.mxu0
    %242 = vdwg.mxu0
    %243 = vmatpush.bf16.msra.mxu0 %v213
    %244 = vmatpush.bf16.msra.mxu0 %v211
    %245 = vmatpush.bf16.msra.mxu0 %v209
    %246 = vmatpush.bf16.msra.mxu0 %v207
    %247 = vmatpush.bf16.msra.mxu0 %v205
    %248 = vmatpush.bf16.msra.mxu0 %v203
    %249 = vmatpush.bf16.msra.mxu0 %v201
    %250 = vmatpush.bf16.msra.mxu0 %v199
    %251 = vmatmul.bf16.gmra.mxu0 %v127
    %v252 = vpop.f32.mrf.mxu0
    %v253 = vadd.f32 %v147, %v252
    %v254 = vpop.f32.mrf.mxu0
    %255 = vdwg.mxu0
    %v256 = vmax.f32 %v240, 0.0
    %v257 = vmax.f32 %v253, 0.0
    %v258 = vpack.c.bf16 %v256, %v256
    %v259 = vpack.c.bf16 %v257, %v257
    %v260 = vld [vmem:[#allocation5] sm:$0xff]
    %v261 = vld [vmem:[#allocation5 + $0x8] sm:$0xff]
    %v262 = vld [vmem:[#allocation5 + $0x10] sm:$0xff]
    %v263 = vld [vmem:[#allocation5 + $0x18] sm:$0xff]
    %v264 = vld [vmem:[#allocation5 + $0x20] sm:$0xff]
    %v265 = vld [vmem:[#allocation5 + $0x28] sm:$0xff]
    %v266 = vld [vmem:[#allocation5 + $0x30] sm:$0xff]
    %v267 = vld [vmem:[#allocation5 + $0x38] sm:$0xff]
    %v268 = vld [vmem:[#allocation5 + $0x40] sm:$0xff]
    %v269 = vld [vmem:[#allocation5 + $0x48] sm:$0xff]
    %v270 = vld [vmem:[#allocation5 + $0x50] sm:$0xff]
    %v271 = vld [vmem:[#allocation5 + $0x58] sm:$0xff]
    %v272 = vld [vmem:[#allocation5 + $0x60] sm:$0xff]
    %v273 = vld [vmem:[#allocation5 + $0x68] sm:$0xff]
    %v274 = vld [vmem:[#allocation5 + $0x70] sm:$0xff]
    %v275 = vld [vmem:[#allocation5 + $0x78] sm:$0xff]
    %v276 = vld [vmem:[#allocation5 + $0x80] sm:$0xff]
    %v277 = vld [vmem:[#allocation5 + $0x88] sm:$0xff]
    %v278 = vld [vmem:[#allocation5 + $0x90] sm:$0xff]
    %v279 = vld [vmem:[#allocation5 + $0x98] sm:$0xff]
    %v280 = vld [vmem:[#allocation5 + $0xa0] sm:$0xff]
    %v281 = vld [vmem:[#allocation5 + $0xa8] sm:$0xff]
    %v282 = vld [vmem:[#allocation5 + $0xb0] sm:$0xff]
    %v283 = vld [vmem:[#allocation5 + $0xb8] sm:$0xff]
    %v284 = vld [vmem:[#allocation5 + $0xc0] sm:$0xff]
    %v285 = vld [vmem:[#allocation5 + $0xc8] sm:$0xff]
    %v286 = vld [vmem:[#allocation5 + $0xd0] sm:$0xff]
    %v287 = vld [vmem:[#allocation5 + $0xd8] sm:$0xff]
    %v288 = vld [vmem:[#allocation5 + $0xe0] sm:$0xff]
    %v289 = vld [vmem:[#allocation5 + $0xe8] sm:$0xff]
    %v290 = vld [vmem:[#allocation5 + $0xf0] sm:$0xff]
    %v291 = vld [vmem:[#allocation5 + $0xf8] sm:$0xff]
    %v292 = vld [vmem:[%s6] sm:$0x3]
    %v294 = vperm.slane %v292, 0
    %v295 = vperm.slane %v292, 1
    %v330 = vunpack.c.l.b16 %v260
    %v331 = vunpack.c.h.b16 %v260
    %v332 = vunpack.c.l.b16 %v261
    %v333 = vunpack.c.h.b16 %v261
    %v334 = vunpack.c.l.b16 %v262
    %v335 = vunpack.c.h.b16 %v262
    %v336 = vunpack.c.l.b16 %v263
    %v337 = vunpack.c.h.b16 %v263
    %v338 = vunpack.c.l.b16 %v264
    %v339 = vunpack.c.h.b16 %v264
    %v340 = vunpack.c.l.b16 %v265
    %v341 = vunpack.c.h.b16 %v265
    %v342 = vunpack.c.l.b16 %v266
    %v343 = vunpack.c.h.b16 %v266
    %v344 = vunpack.c.l.b16 %v267
    %v345 = vunpack.c.h.b16 %v267
    %v346 = vunpack.c.l.b16 %v268
    %v347 = vunpack.c.h.b16 %v268
    %v348 = vunpack.c.l.b16 %v269
    %v349 = vunpack.c.h.b16 %v269
    %v350 = vunpack.c.l.b16 %v270
    %v351 = vunpack.c.h.b16 %v270
    %v352 = vunpack.c.l.b16 %v271
    %v353 = vunpack.c.h.b16 %v271
    %v354 = vunpack.c.l.b16 %v272
    %v355 = vunpack.c.h.b16 %v272
    %v356 = vunpack.c.l.b16 %v273
    %v357 = vunpack.c.h.b16 %v273
    %v358 = vunpack.c.l.b16 %v274
    %v359 = vunpack.c.h.b16 %v274
    %v360 = vunpack.c.l.b16 %v275
    %v361 = vunpack.c.h.b16 %v275
    %v362 = vunpack.c.l.b16 %v276
    %v363 = vunpack.c.h.b16 %v276
    %v364 = vunpack.c.l.b16 %v277
    %v365 = vunpack.c.h.b16 %v277
    %v366 = vunpack.c.l.b16 %v278
    %v367 = vunpack.c.h.b16 %v278
    %v368 = vunpack.c.l.b16 %v279
    %v369 = vunpack.c.h.b16 %v279
    %v370 = vunpack.c.l.b16 %v280
    %v371 = vunpack.c.h.b16 %v280
    %v372 = vunpack.c.l.b16 %v281
    %v373 = vunpack.c.h.b16 %v281
    %v374 = vunpack.c.l.b16 %v282
    %v375 = vunpack.c.h.b16 %v282
    %v376 = vunpack.c.l.b16 %v283
    %v377 = vunpack.c.h.b16 %v283
    %v378 = vunpack.c.l.b16 %v284
    %v379 = vunpack.c.h.b16 %v284
    %v380 = vunpack.c.l.b16 %v285
    %v381 = vunpack.c.h.b16 %v285
    %v382 = vunpack.c.l.b16 %v286
    %v383 = vunpack.c.h.b16 %v286
    %v384 = vunpack.c.l.b16 %v287
    %v385 = vunpack.c.h.b16 %v287
    %v386 = vunpack.c.l.b16 %v288
    %v387 = vunpack.c.h.b16 %v288
    %v388 = vunpack.c.l.b16 %v289
    %v389 = vunpack.c.h.b16 %v289
    %v390 = vunpack.c.l.b16 %v290
    %v391 = vunpack.c.h.b16 %v290
    %v392 = vunpack.c.l.b16 %v291
    %v393 = vunpack.c.h.b16 %v291
    %v394 = vpack.c.b16 %v332, %v330
    %v395 = vpack.c.b16 %v333, %v331
    %v396 = vpack.c.b16 %v336, %v334
    %v397 = vpack.c.b16 %v337, %v335
    %v398 = vpack.c.b16 %v340, %v338
    %v399 = vpack.c.b16 %v341, %v339
    %v400 = vpack.c.b16 %v344, %v342
    %v401 = vpack.c.b16 %v345, %v343
    %v402 = vpack.c.b16 %v348, %v346
    %v403 = vpack.c.b16 %v349, %v347
    %v404 = vpack.c.b16 %v352, %v350
    %v405 = vpack.c.b16 %v353, %v351
    %v406 = vpack.c.b16 %v356, %v354
    %v407 = vpack.c.b16 %v357, %v355
    %v408 = vpack.c.b16 %v360, %v358
    %v409 = vpack.c.b16 %v361, %v359
    %v410 = vpack.c.b16 %v364, %v362
    %v411 = vpack.c.b16 %v365, %v363
    %v412 = vpack.c.b16 %v368, %v366
    %v413 = vpack.c.b16 %v369, %v367
    %v414 = vpack.c.b16 %v372, %v370
    %v415 = vpack.c.b16 %v373, %v371
    %v416 = vpack.c.b16 %v376, %v374
    %v417 = vpack.c.b16 %v377, %v375
    %v418 = vpack.c.b16 %v380, %v378
    %v419 = vpack.c.b16 %v381, %v379
    %v420 = vpack.c.b16 %v384, %v382
    %v421 = vpack.c.b16 %v385, %v383
    %v422 = vpack.c.b16 %v388, %v386
    %v423 = vpack.c.b16 %v389, %v387
    %v424 = vpack.c.b16 %v392, %v390
    %v425 = vpack.c.b16 %v393, %v391
    %458 = vmatpush.bf16.msra.mxu0 %v408
    %459 = vmatpush.bf16.msra.mxu0 %v406
    %460 = vmatpush.bf16.msra.mxu0 %v404
    %461 = vmatpush.bf16.msra.mxu0 %v402
    %462 = vmatpush.bf16.msra.mxu0 %v400
    %463 = vmatpush.bf16.msra.mxu0 %v398
    %464 = vmatpush.bf16.msra.mxu0 %v396
    %465 = vmatpush.bf16.msra.mxu0 %v394
    %466 = vmatmul.bf16.gmra.mxu0 %v258
    %v467 = vpop.f32.mrf.mxu0
    %v468 = vadd.f32 %v294, %v467
    %v469 = vpop.f32.mrf.mxu0
    %470 = vdwg.mxu0
    %471 = vmatpush.bf16.msra.mxu0 %v424
    %472 = vmatpush.bf16.msra.mxu0 %v422
    %473 = vmatpush.bf16.msra.mxu0 %v420
    %474 = vmatpush.bf16.msra.mxu0 %v418
    %475 = vmatpush.bf16.msra.mxu0 %v416
    %476 = vmatpush.bf16.msra.mxu0 %v414
    %477 = vmatpush.bf16.msra.mxu0 %v412
    %478 = vmatpush.bf16.msra.mxu0 %v410
    %479 = vmatmul.bf16.gmra.mxu0 %v259
    %v480 = vpop.f32.mrf.mxu0
    %v481 = vadd.f32 %v468, %v480
    %v482 = vpop.f32.mrf.mxu0
    %483 = vdwg.mxu0
    %484 = vmatpush.bf16.msra.mxu0 %v409
    %485 = vmatpush.bf16.msra.mxu0 %v407
    %486 = vmatpush.bf16.msra.mxu0 %v405
    %487 = vmatpush.bf16.msra.mxu0 %v403
    %488 = vmatpush.bf16.msra.mxu0 %v401
    %489 = vmatpush.bf16.msra.mxu0 %v399
    %490 = vmatpush.bf16.msra.mxu0 %v397
    %491 = vmatpush.bf16.msra.mxu0 %v395
    %492 = vmatmul.bf16.gmra.mxu0 %v258
    %v493 = vpop.f32.mrf.mxu0
    %v494 = vadd.f32 %v295, %v493
    %v495 = vpop.f32.mrf.mxu0
    %496 = vdwg.mxu0
    %497 = vmatpush.bf16.msra.mxu0 %v425
    %498 = vmatpush.bf16.msra.mxu0 %v423
    %499 = vmatpush.bf16.msra.mxu0 %v421
    %500 = vmatpush.bf16.msra.mxu0 %v419
    %501 = vmatpush.bf16.msra.mxu0 %v417
    %502 = vmatpush.bf16.msra.mxu0 %v415
    %503 = vmatpush.bf16.msra.mxu0 %v413
    %504 = vmatpush.bf16.msra.mxu0 %v411
    %505 = vmatmul.bf16.gmra.mxu0 %v259
    %v506 = vpop.f32.mrf.mxu0
    %v507 = vadd.f32 %v494, %v506
    %v508 = vpop.f32.mrf.mxu0
    %509 = vdwg.mxu0
    %v510 = vmax.f32 %v481, 0.0
    %v511 = vmax.f32 %v507, 0.0
    %v512 = vpack.c.bf16 %v510, %v510
    %v513 = vpack.c.bf16 %v511, %v511
    %v514 = vld [vmem:[#allocation7] sm:$0xf]
    %v515 = vld [vmem:[#allocation7 + $0x4] sm:$0xf]
    %v516 = vld [vmem:[#allocation7 + $0x8] sm:$0xf]
    %v517 = vld [vmem:[#allocation7 + $0xc] sm:$0xf]
    %v518 = vld [vmem:[#allocation7 + $0x10] sm:$0xf]
    %v519 = vld [vmem:[#allocation7 + $0x14] sm:$0xf]
    %v520 = vld [vmem:[#allocation7 + $0x18] sm:$0xf]
    %v521 = vld [vmem:[#allocation7 + $0x1c] sm:$0xf]
    %v522 = vld [vmem:[#allocation7 + $0x20] sm:$0xf]
    %v523 = vld [vmem:[#allocation7 + $0x24] sm:$0xf]
    %v524 = vld [vmem:[#allocation7 + $0x28] sm:$0xf]
    %v525 = vld [vmem:[#allocation7 + $0x2c] sm:$0xf]
    %v526 = vld [vmem:[#allocation7 + $0x30] sm:$0xf]
    %v527 = vld [vmem:[#allocation7 + $0x34] sm:$0xf]
    %v528 = vld [vmem:[#allocation7 + $0x38] sm:$0xf]
    %v529 = vld [vmem:[#allocation7 + $0x3c] sm:$0xf]
    %v530 = vld [vmem:[#allocation7 + $0x40] sm:$0xf]
    %v531 = vld [vmem:[#allocation7 + $0x44] sm:$0xf]
    %v532 = vld [vmem:[#allocation7 + $0x48] sm:$0xf]
    %v533 = vld [vmem:[#allocation7 + $0x4c] sm:$0xf]
    %v534 = vld [vmem:[#allocation7 + $0x50] sm:$0xf]
    %v535 = vld [vmem:[#allocation7 + $0x54] sm:$0xf]
    %v536 = vld [vmem:[#allocation7 + $0x58] sm:$0xf]
    %v537 = vld [vmem:[#allocation7 + $0x5c] sm:$0xf]
    %v538 = vld [vmem:[#allocation7 + $0x60] sm:$0xf]
    %v539 = vld [vmem:[#allocation7 + $0x64] sm:$0xf]
    %v540 = vld [vmem:[#allocation7 + $0x68] sm:$0xf]
    %v541 = vld [vmem:[#allocation7 + $0x6c] sm:$0xf]
    %v542 = vld [vmem:[#allocation7 + $0x70] sm:$0xf]
    %v543 = vld [vmem:[#allocation7 + $0x74] sm:$0xf]
    %v544 = vld [vmem:[#allocation7 + $0x78] sm:$0xf]
    %v545 = vld [vmem:[#allocation7 + $0x7c] sm:$0xf]
    %v546 = vld [vmem:[%s8] sm:$0x1]
    %v548 = vperm.slane %v546, 0
    %v582 = vunpack.c.l.b16 %v514
    %v583 = vunpack.c.l.b16 %v515
    %v584 = vunpack.c.l.b16 %v516
    %v585 = vunpack.c.l.b16 %v517
    %v586 = vunpack.c.l.b16 %v518
    %v587 = vunpack.c.l.b16 %v519
    %v588 = vunpack.c.l.b16 %v520
    %v589 = vunpack.c.l.b16 %v521
    %v590 = vunpack.c.l.b16 %v522
    %v591 = vunpack.c.l.b16 %v523
    %v592 = vunpack.c.l.b16 %v524
    %v593 = vunpack.c.l.b16 %v525
    %v594 = vunpack.c.l.b16 %v526
    %v595 = vunpack.c.l.b16 %v527
    %v596 = vunpack.c.l.b16 %v528
    %v597 = vunpack.c.l.b16 %v529
    %v598 = vunpack.c.l.b16 %v530
    %v599 = vunpack.c.l.b16 %v531
    %v600 = vunpack.c.l.b16 %v532
    %v601 = vunpack.c.l.b16 %v533
    %v602 = vunpack.c.l.b16 %v534
    %v603 = vunpack.c.l.b16 %v535
    %v604 = vunpack.c.l.b16 %v536
    %v605 = vunpack.c.l.b16 %v537
    %v606 = vunpack.c.l.b16 %v538
    %v607 = vunpack.c.l.b16 %v539
    %v608 = vunpack.c.l.b16 %v540
    %v609 = vunpack.c.l.b16 %v541
    %v610 = vunpack.c.l.b16 %v542
    %v611 = vunpack.c.l.b16 %v543
    %v612 = vunpack.c.l.b16 %v544
    %v613 = vunpack.c.l.b16 %v545
    %v614 = vpack.c.b16 %v583, %v582
    %v615 = vpack.c.b16 %v585, %v584
    %v616 = vpack.c.b16 %v587, %v586
    %v617 = vpack.c.b16 %v589, %v588
    %v618 = vpack.c.b16 %v591, %v590
    %v619 = vpack.c.b16 %v593, %v592
    %v620 = vpack.c.b16 %v595, %v594
    %v621 = vpack.c.b16 %v597, %v596
    %v622 = vpack.c.b16 %v599, %v598
    %v623 = vpack.c.b16 %v601, %v600
    %v624 = vpack.c.b16 %v603, %v602
    %v625 = vpack.c.b16 %v605, %v604
    %v626 = vpack.c.b16 %v607, %v606
    %v627 = vpack.c.b16 %v609, %v608
    %v628 = vpack.c.b16 %v611, %v610
    %v629 = vpack.c.b16 %v613, %v612
    %646 = vmatpush.bf16.msra.mxu0 %v621
    %647 = vmatpush.bf16.msra.mxu0 %v620
    %648 = vmatpush.bf16.msra.mxu0 %v619
    %649 = vmatpush.bf16.msra.mxu0 %v618
    %650 = vmatpush.bf16.msra.mxu0 %v617
    %651 = vmatpush.bf16.msra.mxu0 %v616
    %652 = vmatpush.bf16.msra.mxu0 %v615
    %653 = vmatpush.bf16.msra.mxu0 %v614
    %654 = vmatmul.bf16.gmra.mxu0 %v512
    %v655 = vpop.f32.mrf.mxu0
    %v656 = vadd.f32 %v548, %v655
    %v657 = vpop.f32.mrf.mxu0
    %658 = vdwg.mxu0
    %659 = vmatpush.bf16.msra.mxu0 %v629
    %660 = vmatpush.bf16.msra.mxu0 %v628
    %661 = vmatpush.bf16.msra.mxu0 %v627
    %662 = vmatpush.bf16.msra.mxu0 %v626
    %663 = vmatpush.bf16.msra.mxu0 %v625
    %664 = vmatpush.bf16.msra.mxu0 %v624
    %665 = vmatpush.bf16.msra.mxu0 %v623
    %666 = vmatpush.bf16.msra.mxu0 %v622
    %667 = vmatmul.bf16.gmra.mxu0 %v513
    %v668 = vpop.f32.mrf.mxu0
    %v669 = vadd.f32 %v656, %v668
    %v670 = vpop.f32.mrf.mxu0
    %671 = vdwg.mxu0
    %v672 = vmax.f32 %v669, 0.0
    %v673 = vpack.c.bf16 %v672, %v672
    %v674 = vld [vmem:[%s9] sm:$0xf]
    %v675 = vld [vmem:[%s9 + $0x4] sm:$0xf]
    %v676 = vld [vmem:[%s9 + $0x8] sm:$0xf]
    %v677 = vld [vmem:[%s9 + $0xc] sm:$0xf]
    %v678 = vld [vmem:[%s9 + $0x10] sm:$0xf]
    %v679 = vld [vmem:[%s9 + $0x14] sm:$0xf]
    %v680 = vld [vmem:[%s9 + $0x18] sm:$0xf]
    %v681 = vld [vmem:[%s9 + $0x1c] sm:$0xf]
    %v682 = vld [vmem:[%s9 + $0x20] sm:$0xf]
    %v683 = vld [vmem:[%s9 + $0x24] sm:$0xf]
    %v684 = vld [vmem:[%s9 + $0x28] sm:$0xf]
    %v685 = vld [vmem:[%s9 + $0x2c] sm:$0xf]
    %v686 = vld [vmem:[%s9 + $0x30] sm:$0xf]
    %v687 = vld [vmem:[%s9 + $0x34] sm:$0xf]
    %v688 = vld [vmem:[%s9 + $0x38] sm:$0xf]
    %v689 = vld [vmem:[%s9 + $0x3c] sm:$0xf]
    %v690 = vld [vmem:[#allocation2] sm:$0x1]
    %v692 = vperm.slane %v690, 0
    %v710 = vunpack.c.l.b16 %v674
    %v711 = vunpack.c.l.b16 %v675
    %v712 = vunpack.c.l.b16 %v676
    %v713 = vunpack.c.l.b16 %v677
    %v714 = vunpack.c.l.b16 %v678
    %v715 = vunpack.c.l.b16 %v679
    %v716 = vunpack.c.l.b16 %v680
    %v717 = vunpack.c.l.b16 %v681
    %v718 = vunpack.c.l.b16 %v682
    %v719 = vunpack.c.l.b16 %v683
    %v720 = vunpack.c.l.b16 %v684
    %v721 = vunpack.c.l.b16 %v685
    %v722 = vunpack.c.l.b16 %v686
    %v723 = vunpack.c.l.b16 %v687
    %v724 = vunpack.c.l.b16 %v688
    %v725 = vunpack.c.l.b16 %v689
    %v726 = vpack.c.b16 %v711, %v710
    %v727 = vpack.c.b16 %v713, %v712
    %v728 = vpack.c.b16 %v715, %v714
    %v729 = vpack.c.b16 %v717, %v716
    %v730 = vpack.c.b16 %v719, %v718
    %v731 = vpack.c.b16 %v721, %v720
    %v732 = vpack.c.b16 %v723, %v722
    %v733 = vpack.c.b16 %v725, %v724
    %742 = vmatpush.bf16.msra.mxu0 %v733
    %743 = vmatpush.bf16.msra.mxu0 %v732
    %744 = vmatpush.bf16.msra.mxu0 %v731
    %745 = vmatpush.bf16.msra.mxu0 %v730
    %746 = vmatpush.bf16.msra.mxu0 %v729
    %747 = vmatpush.bf16.msra.mxu0 %v728
    %748 = vmatpush.bf16.msra.mxu0 %v727
    %749 = vmatpush.bf16.msra.mxu0 %v726
    %750 = vmatmul.bf16.gmra.mxu0 %v673
    %v751 = vpop.f32.mrf.mxu0
    %v752 = vadd.f32 %v692, %v751
    %v753 = vpop.f32.mrf.mxu0
    %754 = vdwg.mxu0
    %v755 = vxor.u32 %v752, 2147483648
    %v756 = vmul.f32 %v755, 1.442695
    %v757 = vpow.pop %v756
    %v758 = vadd.f32 %v757, 1.0
    %v759 = vrcp.pop %v758
    %v760 = vmul.f32 %v758, %v759
    %v761 = vsub.f32 1.0, %v760
    %v762 = vmul.f32 %v759, %v761
    %v763 = vadd.f32 %v759, %v762
    %vm764 = vweird.f32 %v758
    %vm765 = vweird.f32 %v759
    %vm766 = vmor %vm764, %vm765
    %v767 = vsel %vm766, %v759, %v763
    %v768 = vand.u32 2147483647, %v758
    %vm769 = vcmp.eq.f32.partialorder %v768, 8.507059e+37
    %v770 = vand.u32 %v758, 2147483648
    %v771 = vor.u32 1.1754944e-38, %v770
    %v772 = vsel %vm769, %v771, %v767
    %v773 = vmul.f32 1.0, %v772
    %vm774 = vcmask 7168
    %775 = vst.msk [vmem:[%s11] sm:$0xff] %vm774, %v773
    // Predicated region
    $region58: #{tpu_custom_call.1} parent=1 // pred_check
      _
    $region59: #{tpu_custom_call.1} parent=1 // pred_check_branch
      %777 = sbr.rel (0) target = $region61
    $region60: #{tpu_custom_call.1} parent=1 // pred_region
      _
    $region61: #{tpu_custom_call.1} parent=1 // pred_fallthru
      _
    // Predicated region
    $region62: #{tpu_custom_call.1} parent=1 // pred_check
      _
    $region63: #{tpu_custom_call.1} parent=1 // pred_check_branch
      %779 = sbr.rel (0) target = $region65
    $region64: #{tpu_custom_call.1} parent=1 // pred_region
      _
    $region65: #{tpu_custom_call.1} parent=1 // pred_fallthru
      _
    %780 = vsyncpa [#allocation4], 1
    %781 = vsyncpa [#allocation6], 1

</llo_original>
